<compile_context>
chip_gen: v5e
topology: v5e:2x2
jax: 0.10.0
libtpu: 0.0.40
codegen_flags: <defaults>
</compile_context>

<pallas_src>
import functools

import jax
import jax.numpy as jnp
from jax.experimental import pallas as pl
from jax.experimental.pallas import tpu as pltpu


def _lora_linear_kernel(x_ref, wt_ref, b_ref, *rest, has_lora):
    """One (tm, tn) output tile, accumulated over the K (IN) grid axis.

    x_ref:   (tm, tk)  input tile
    wt_ref:  (tk, tn)  weight tile (stored as W^T = [IN, OUT]), f32 or bf16
    b_ref:   (1, tn)   bias tile
    low_ref: (tm, R)   precomputed x @ A tile (only if has_lora)
    bb_ref:  (R, tn)   LoRA B tile (only if has_lora)
    o_ref:   (tm, tn)  output tile
    acc_ref: (tm, tn)  f32 accumulator for x @ W^T (+ bias)
    """
    if has_lora:
        low_ref, bb_ref, o_ref, acc_ref = rest
    else:
        o_ref, acc_ref = rest

    k = pl.program_id(2)

    @pl.when(k == 0)
    def _init():
        # Fold the bias into the accumulator init: the init write happens
        # anyway, so the finalize epilogue loses one (tm, tn) VPU add.
        acc_ref[...] = jnp.broadcast_to(
            b_ref[...].astype(jnp.float32), acc_ref.shape)

    x = x_ref[...]
    if x.dtype != wt_ref.dtype:
        # bf16 weight path: cast the activation tile so the MXU runs its
        # native bf16 pass; accumulation stays f32.
        x = x.astype(wt_ref.dtype)
    acc_ref[...] += jnp.dot(x, wt_ref[...], preferred_element_type=jnp.float32)

    @pl.when(k == pl.num_programs(2) - 1)
    def _finalize():
        out = acc_ref[...]
        if has_lora:
            # Rank-R correction, once per output tile (not per K step).
            out = out + jnp.dot(low_ref[...], bb_ref[...],
                                preferred_element_type=jnp.float32)
        o_ref[...] = out.astype(o_ref.dtype)


def _pick_tile(dim, candidates):
    for c in candidates:
        if dim % c == 0:
            return c
    return dim  # fall back to the full (untiled) dimension


def lora_linear(x, w_t, b, lora_A=None, lora_B=None, *,
                tm=None, tn=None, tk=None, weight_dtype=jnp.bfloat16):
    """LoRALinear forward: out = x @ W^T + b + (x @ A) @ B.

    x:      [M, IN]
    w_t:    [IN, OUT]  linear weight stored pre-transposed (W^T), streamed in
                       MXU-friendly (K, N) layout. Cast once to `weight_dtype`
                       (default bf16) if not already; pass weight_dtype=None
                       or jnp.float32 for exact f32 semantics.
    b:      [OUT]
    lora_A: [IN, R] or None (r == 0)
    lora_B: [R, OUT] or None
    """
    M, IN = x.shape
    IN_w, OUT = w_t.shape
    assert IN_w == IN

    # One-time weight cast (outside the kernel / grid loop). bf16 halves
    # weight HBM traffic (the binding cost for small M) and feeds the bf16 MXU.
    if weight_dtype is not None and w_t.dtype != jnp.dtype(weight_dtype):
        w_t = w_t.astype(weight_dtype)

    has_lora = (lora_A is not None) and (lora_B is not None)
    if has_lora:
        R = lora_A.shape[1]
        # Hoist the rank-R projection out of the kernel: it is independent of
        # the output-column tile j and of the K loop, so computing it inside
        # the grid re-issued a full-width MXU pass per (j, k) step and pulled
        # (tk, R) strided DMAs. One tiny XLA matmul here instead.
        low = jnp.dot(x, lora_A, preferred_element_type=jnp.float32)
        low = low.astype(jnp.float32)
        bb = lora_B.astype(jnp.float32)
    else:
        R = 0

    # Tile selection: lane-dense N tiles (multiples of 128, preferring 256+
    # for the v6e/v7x 256-wide MXU), K tiles of 512+ to keep the weight
    # stream pipelined, dtype-aware M tiles up to 512.
    min_tm = max(8, 32 // x.dtype.itemsize)  # 8 f32 / 16 bf16 / 32 int8-fp8
    tm_cands = tuple(c for c in (512, 256, 128, 64, 32, 16, 8) if c >= min_tm)
    if tm is None:
        tm = _pick_tile(M, tm_cands)
    if tn is None:
        tn = _pick_tile(OUT, (512, 256, 128))
    if tk is None:
        tk = _pick_tile(IN, (512, 1024, 256, 128))
    assert M % tm == 0 and OUT % tn == 0 and IN % tk == 0

    grid = (M // tm, OUT // tn, IN // tk)
    b2 = b.reshape(1, OUT)

    in_specs = [
        pl.BlockSpec((tm, tk), lambda i, j, k: (i, k)),   # x tile
        pl.BlockSpec((tk, tn), lambda i, j, k: (k, j)),   # W^T tile
        pl.BlockSpec((1, tn), lambda i, j, k: (0, j)),    # bias tile
    ]
    args = [x, w_t, b2]
    if has_lora:
        in_specs += [
            pl.BlockSpec((tm, R), lambda i, j, k: (i, 0)),  # low = x @ A tile
            pl.BlockSpec((R, tn), lambda i, j, k: (0, j)),  # lora_B tile
        ]
        args += [low, bb]

    # VMEM budget: double-buffered input/output tiles + f32 scratch, with
    # headroom, capped generation-aware (v7x TC has only 64 MiB VMEM).
    est = 2 * (tm * tk * x.dtype.itemsize
               + tk * tn * w_t.dtype.itemsize
               + tn * b.dtype.itemsize)
    if has_lora:
        est += 2 * (tm * R * 4 + R * tn * 4)
    est += 2 * tm * tn * x.dtype.itemsize   # double-buffered output tile
    est += 4 * tm * tn                      # f32 accumulator scratch
    try:
        vmem_cap = int(0.75 * pltpu.get_tpu_info().vmem_capacity_bytes)
    except Exception:
        vmem_cap = 48 * 2 ** 20
    vmem_limit = int(min(vmem_cap, max(16 * 2 ** 20, 2 * est)))

    flops = 2 * M * OUT * IN + M * OUT
    bytes_accessed = (x.size * x.dtype.itemsize
                      + w_t.size * w_t.dtype.itemsize
                      + b.size * b.dtype.itemsize
                      + M * OUT * x.dtype.itemsize)
    if has_lora:
        flops += 2 * M * R * OUT + M * OUT
        bytes_accessed += (M * R + R * OUT) * 4

    kernel = functools.partial(_lora_linear_kernel, has_lora=has_lora)

    return pl.pallas_call(
        kernel,
        out_shape=jax.ShapeDtypeStruct((M, OUT), x.dtype),
        grid_spec=pltpu.PrefetchScalarGridSpec(
            num_scalar_prefetch=0,
            grid=grid,
            in_specs=in_specs,
            out_specs=pl.BlockSpec((tm, tn), lambda i, j, k: (i, j)),
            scratch_shapes=[
                pltpu.VMEM((tm, tn), jnp.float32),  # base (+bias) accumulator
            ],
        ),
        compiler_params=pltpu.CompilerParams(
            # LoRA precompute keeps both i and j hazard-free for megacore.
            dimension_semantics=("parallel", "parallel", "arbitrary"),
            vmem_limit_bytes=vmem_limit,
        ),
        cost_estimate=pl.CostEstimate(
            flops=flops, transcendentals=0, bytes_accessed=bytes_accessed),
    )(*args)


if __name__ == "__main__":
    # Small, lane-aligned shapes consistent with the module.
    M, IN, OUT, R, ALPHA = 16, 256, 256, 4, 1

    key = jax.random.PRNGKey(0)
    kx, kw, kb, ka, kbb = jax.random.split(key, 5)

    x = jax.random.normal(kx, (M, IN), dtype=jnp.float32)
    bound = 1.0 / (IN ** 0.5)
    # Weight stored once in [IN, OUT] (= W^T) layout; forward math is
    # identical to x @ W.T + b.
    w_t = jax.random.uniform(kw, (IN, OUT), minval=-bound, maxval=bound,
                             dtype=jnp.float32)
    # bf16 copy stored once up front (no per-call cast) for the fast path.
    w_t_bf16 = w_t.astype(jnp.bfloat16)
    b = jax.random.uniform(kb, (OUT,), minval=-bound, maxval=bound,
                           dtype=jnp.float32)
    # Matches the PyTorch module init (both A and B scaled by alpha/r).
    lora_A = jax.random.normal(ka, (IN, R), dtype=jnp.float32) * (ALPHA / R)
    lora_B = jax.random.normal(kbb, (R, OUT), dtype=jnp.float32) * (ALPHA / R)

    ref = x @ w_t + b + (x @ lora_A) @ lora_B
    ref_nolora = x @ w_t + b

    # 1) Exact f32 path (weight_dtype=f32): bit-level identical math modulo
    #    tiling order, auto-selected tiles.
    out_f32 = jax.block_until_ready(
        lora_linear(x, w_t, b, lora_A, lora_B, weight_dtype=jnp.float32))
    assert out_f32.shape == (M, OUT)
    assert jnp.allclose(out_f32, ref, atol=1e-4, rtol=1e-5), "mismatch (f32)"

    # 2) Default bf16-weight path (mixed precision, f32 accumulation).
    out_bf16 = jax.block_until_ready(
        lora_linear(x, w_t_bf16, b, lora_A, lora_B))
    assert jnp.allclose(out_bf16, ref, atol=5e-2, rtol=2e-2), "mismatch (bf16)"

    # 3) Explicit small tiles (f32): exercises the (i, j, k) grid and the
    #    K-axis accumulator init/finalize path with multiple k steps.
    out_tiled = jax.block_until_ready(
        lora_linear(x, w_t, b, lora_A, lora_B,
                    tm=8, tn=128, tk=128, weight_dtype=jnp.float32))
    assert jnp.allclose(out_tiled, ref, atol=1e-4, rtol=1e-5), "mismatch (tiled)"

    # 4) r == 0 path (plain linear, dedicated no-LoRA kernel).
    out_nolora = jax.block_until_ready(
        lora_linear(x, w_t, b, None, None, weight_dtype=jnp.float32))
    assert jnp.allclose(out_nolora, ref_nolora, atol=1e-4, rtol=1e-5), \
        "mismatch (r=0)"

    print("KERNEL_OK")
</pallas_src>

<mosaic_0001>
module attributes {stable_mosaic.version = 11 : i64} {
  func.func @_lora_linear_kernel(%arg0: i32, %arg1: i32, %arg2: i32, %arg3: memref<16x256xf32, #tpu.memory_space<vmem>>, %arg4: memref<256x256xf32, #tpu.memory_space<vmem>>, %arg5: memref<1x256xf32, #tpu.memory_space<vmem>>, %arg6: memref<16x4xf32, #tpu.memory_space<vmem>>, %arg7: memref<4x256xf32, #tpu.memory_space<vmem>>, %arg8: memref<16x256xf32, #tpu.memory_space<vmem>>, %arg9: memref<16x256xf32, #tpu.memory_space<vmem>>) attributes {dimension_semantics = [#tpu.dimension_semantics<parallel>, #tpu.dimension_semantics<parallel>, #tpu.dimension_semantics<arbitrary>], iteration_bounds = array<i64: 1, 1, 1>, scalar_prefetch = 0 : i64, scratch_operands = 1 : i64, tpu.core_type = #tpu.core_type<tc>, window_params = [{transform_indices = @transform_0, window_bounds = array<i64: 16, 256>}, {transform_indices = @transform_1, window_bounds = array<i64: 256, 256>}, {transform_indices = @transform_2, window_bounds = array<i64: 1, 256>}, {transform_indices = @transform_3, window_bounds = array<i64: 16, 4>}, {transform_indices = @transform_4, window_bounds = array<i64: 4, 256>}, {transform_indices = @transform_5, window_bounds = array<i64: 16, 256>}]} {
    %c0_i32 = arith.constant 0 : i32
    %0 = arith.cmpi eq, %arg2, %c0_i32 : i32
    %1 = arith.extui %0 : i1 to i32
    %c0_i32_0 = arith.constant 0 : i32
    %2 = arith.cmpi ne, %1, %c0_i32_0 : i32
    scf.if %2 {
      %c0_10 = arith.constant 0 : index
      %c0_11 = arith.constant 0 : index
      %12 = vector.load %arg5[%c0_10, %c0_11] : memref<1x256xf32, #tpu.memory_space<vmem>>, vector<1x256xf32>
      %13 = vector.shape_cast %12 : vector<1x256xf32> to vector<1x256xf32>
      %14 = vector.broadcast %13 : vector<1x256xf32> to vector<16x256xf32>
      %c0_12 = arith.constant 0 : index
      %c0_13 = arith.constant 0 : index
      %15 = vector.load %arg9[%c0_12, %c0_13] : memref<16x256xf32, #tpu.memory_space<vmem>>, vector<16x256xf32>
      tpu.vector_store %arg9[%c0_12, %c0_13], %14 {strides = array<i32>} : memref<16x256xf32, #tpu.memory_space<vmem>>, vector<16x256xf32>,
    } else {
    }
    %c0 = arith.constant 0 : index
    %c0_1 = arith.constant 0 : index
    %3 = vector.load %arg3[%c0, %c0_1] : memref<16x256xf32, #tpu.memory_space<vmem>>, vector<16x256xf32>
    %c0_2 = arith.constant 0 : index
    %c0_3 = arith.constant 0 : index
    %4 = vector.load %arg9[%c0_2, %c0_3] : memref<16x256xf32, #tpu.memory_space<vmem>>, vector<16x256xf32>
    %c0_4 = arith.constant 0 : index
    %c0_5 = arith.constant 0 : index
    %5 = vector.load %arg4[%c0_4, %c0_5] : memref<256x256xf32, #tpu.memory_space<vmem>>, vector<256x256xf32>
    %cst = arith.constant dense<0.000000e+00> : vector<16x256xf32>
    %6 = tpu.matmul %3, %5, %cst {dimension_numbers = #tpu.dot_dimension_numbers<[1], [0], [0], [1], [0, 0, 1, 1], [], []>} : vector<16x256xf32>, vector<256x256xf32>, vector<16x256xf32> -> vector<16x256xf32>
    %7 = arith.addf %4, %6 : vector<16x256xf32>
    %c0_6 = arith.constant 0 : index
    %c0_7 = arith.constant 0 : index
    %8 = vector.load %arg9[%c0_6, %c0_7] : memref<16x256xf32, #tpu.memory_space<vmem>>, vector<16x256xf32>
    tpu.vector_store %arg9[%c0_6, %c0_7], %7 {strides = array<i32>} : memref<16x256xf32, #tpu.memory_space<vmem>>, vector<16x256xf32>,
    %c0_i32_8 = arith.constant 0 : i32
    %9 = arith.cmpi eq, %arg2, %c0_i32_8 : i32
    %10 = arith.extui %9 : i1 to i32
    %c0_i32_9 = arith.constant 0 : i32
    %11 = arith.cmpi ne, %10, %c0_i32_9 : i32
    scf.if %11 {
      %c0_10 = arith.constant 0 : index
      %c0_11 = arith.constant 0 : index
      %12 = vector.load %arg9[%c0_10, %c0_11] : memref<16x256xf32, #tpu.memory_space<vmem>>, vector<16x256xf32>
      %c0_12 = arith.constant 0 : index
      %c0_13 = arith.constant 0 : index
      %13 = vector.load %arg6[%c0_12, %c0_13] : memref<16x4xf32, #tpu.memory_space<vmem>>, vector<16x4xf32>
      %c0_14 = arith.constant 0 : index
      %c0_15 = arith.constant 0 : index
      %14 = vector.load %arg7[%c0_14, %c0_15] : memref<4x256xf32, #tpu.memory_space<vmem>>, vector<4x256xf32>
      %cst_16 = arith.constant dense<0.000000e+00> : vector<16x256xf32>
      %15 = tpu.matmul %13, %14, %cst_16 {dimension_numbers = #tpu.dot_dimension_numbers<[1], [0], [0], [1], [0, 0, 1, 1], [], []>} : vector<16x4xf32>, vector<4x256xf32>, vector<16x256xf32> -> vector<16x256xf32>
      %16 = arith.addf %12, %15 : vector<16x256xf32>
      %c0_17 = arith.constant 0 : index
      %c0_18 = arith.constant 0 : index
      %17 = vector.load %arg8[%c0_17, %c0_18] : memref<16x256xf32, #tpu.memory_space<vmem>>, vector<16x256xf32>
      tpu.vector_store %arg8[%c0_17, %c0_18], %16 {strides = array<i32>} : memref<16x256xf32, #tpu.memory_space<vmem>>, vector<16x256xf32>,
    } else {
    }
    return
  }
  func.func @transform_0(%arg0: i32, %arg1: i32, %arg2: i32) -> (i32, i32) {
    %c0_i32 = arith.constant 0 : i32
    return %arg0, %arg2 : i32, i32
  }
  func.func @transform_1(%arg0: i32, %arg1: i32, %arg2: i32) -> (i32, i32) {
    %c0_i32 = arith.constant 0 : i32
    return %arg2, %arg1 : i32, i32
  }
  func.func @transform_2(%arg0: i32, %arg1: i32, %arg2: i32) -> (i32, i32) {
    %c0_i32 = arith.constant 0 : i32
    %c0_i32_0 = arith.constant 0 : i32
    return %c0_i32, %arg1 : i32, i32
  }
  func.func @transform_3(%arg0: i32, %arg1: i32, %arg2: i32) -> (i32, i32) {
    %c0_i32 = arith.constant 0 : i32
    %c0_i32_0 = arith.constant 0 : i32
    return %arg0, %c0_i32 : i32, i32
  }
  func.func @transform_4(%arg0: i32, %arg1: i32, %arg2: i32) -> (i32, i32) {
    %c0_i32 = arith.constant 0 : i32
    %c0_i32_0 = arith.constant 0 : i32
    return %c0_i32, %arg1 : i32, i32
  }
  func.func @transform_5(%arg0: i32, %arg1: i32, %arg2: i32) -> (i32, i32) {
    %c0_i32 = arith.constant 0 : i32
    return %arg0, %arg1 : i32, i32
  }
}

</mosaic_0001>

<llo_original>
// kernel: tpu_custom_call.1
$region0: #{tpu_custom_call.1}
  #allocation0 [shape = 'u32[]', space=smem, size = 0x4, offset = 0x4, fixed_abs, tag = 'smem constant byte address 0x4 - core index']
  #allocation1 [shape = 'u32[72,128]{1,0:T(1,128)}', space=vmem, size = 0x9000, scoped, tag = 'internal scratch']
  #allocation2 [shape = 'f32[16,256]{1,0:T(8,128)}', space=vmem, size = 0x4000, scoped, tag = 'scratch operand']
  %s0 = inlined_call_operand.hbm [shape: f32[16,256], index: 0, kind: input, shape index: {}]
  %s1 = inlined_call_operand.hbm [shape: f32[256,256], index: 1, kind: input, shape index: {}]
  %s2 = inlined_call_operand.vmem [shape: f32[1,256], index: 2, kind: input, shape index: {}]
  %s3 = inlined_call_operand.vmem [shape: f32[16,4], index: 3, kind: input, shape index: {}]
  %s4 = inlined_call_operand.vmem [shape: f32[4,256], index: 4, kind: input, shape index: {}]
  %s5 = inlined_call_operand.hbm [shape: f32[16,256], index: 5, kind: output, shape index: {}]
  %s6 = sld [smem:[#allocation0]]
  $region46: #{tpu_custom_call.1} parent=0
    _
  %s8 = ssub.s32 1, %s6
  %s9 = scalar_select 0, %s8, %s6
  $region1: #{tpu_custom_call.1} parent=0
    #allocation3 [shape = 'u8[16384]{0}', space=vmem, size = 0x4000, scoped, tag = 'input window, operand 0, single buffered']
    #allocation4 [shape = 's32[1]{0}', space=sflag, size = 0x4, scoped, tag = 'scoped memory for tpu_custom_call.1']
    #allocation5 [shape = 's32[1]{0}', space=sflag, size = 0x4, scoped, tag = 'scoped memory for tpu_custom_call.1']
    #allocation6 [shape = 'u8[262144]{0}', space=vmem, size = 0x40000, scoped, tag = 'input window, operand 1, single buffered']
    #allocation7 [shape = 's32[1]{0}', space=sflag, size = 0x4, scoped, tag = 'scoped memory for tpu_custom_call.1']
    #allocation8 [shape = 'u8[16384]{0}', space=vmem, size = 0x4000, scoped, tag = 'output window, operand 0, single buffered']
    %10 = vsyncpa [#allocation4], 0
    %11 = vsyncpa [#allocation7], 0
    %12 = vsyncpa [#allocation5], 0
    // Predicated region
    $region2: #{tpu_custom_call.1} parent=1 // pred_check
      _
    $region3: #{tpu_custom_call.1} parent=1 // pred_check_branch
      %14 = sbr.rel (0) target = $region5
    $region4: #{tpu_custom_call.1} parent=1 // pred_region
      %16 = vsyncadd [#allocation4], 0
      %s17 = sshll.u32 %s0, 4
      %s18 = int_to_ptr.hbm [resolvable:$true] %s17
      %s19 = sshll.u32 [#allocation3], 4
      %s20 = int_to_ptr.vmem [resolvable:$true] %s19
      %25 = dma.hbm_to_vmem [thread:$0]  %s18, 512, %s20, [#allocation4], 256, 256, 16
    $region5: #{tpu_custom_call.1} parent=1 // pred_fallthru
      _
    // Predicated region
    $region6: #{tpu_custom_call.1} parent=1 // pred_check
      _
    $region7: #{tpu_custom_call.1} parent=1 // pred_check_branch
      %27 = sbr.rel (0) target = $region9
    $region8: #{tpu_custom_call.1} parent=1 // pred_region
      %29 = vsyncadd [#allocation7], 0
      %s30 = sshll.u32 %s1, 4
      %s31 = int_to_ptr.hbm [resolvable:$true] %s30
      %s32 = sshll.u32 [#allocation6], 4
      %s33 = int_to_ptr.vmem [resolvable:$true] %s32
      %38 = dma.hbm_to_vmem [thread:$0]  %s31, 8192, %s33, [#allocation7], 256, 256, 16
    $region9: #{tpu_custom_call.1} parent=1 // pred_fallthru
      _
    // Predicated region
    $region10: #{tpu_custom_call.1} parent=1 // pred_check
      _
    $region11: #{tpu_custom_call.1} parent=1 // pred_check_branch
      %40 = sbr.rel (0) target = $region13
    $region12: #{tpu_custom_call.1} parent=1 // pred_region
      _
    $region13: #{tpu_custom_call.1} parent=1 // pred_fallthru
      _
    // Predicated region
    $region14: #{tpu_custom_call.1} parent=1 // pred_check
      _
    $region15: #{tpu_custom_call.1} parent=1 // pred_check_branch
      %42 = sbr.rel (0) target = $region17
    $region16: #{tpu_custom_call.1} parent=1 // pred_region
      _
    $region17: #{tpu_custom_call.1} parent=1 // pred_fallthru
      _
    // Predicated region
    $region18: #{tpu_custom_call.1} parent=1 // pred_check
      _
    $region19: #{tpu_custom_call.1} parent=1 // pred_check_branch
      %44 = sbr.rel (0) target = $region21
    $region20: #{tpu_custom_call.1} parent=1 // pred_region
      _
    $region21: #{tpu_custom_call.1} parent=1 // pred_fallthru
      _
    // Predicated region
    $region22: #{tpu_custom_call.1} parent=1 // pred_check
      _
    $region23: #{tpu_custom_call.1} parent=1 // pred_check_branch
      %46 = sbr.rel (0) target = $region25
    $region24: #{tpu_custom_call.1} parent=1 // pred_region
      %48 = dma.done [#allocation4], 512
    $region25: #{tpu_custom_call.1} parent=1 // pred_fallthru
      _
    // Predicated region
    $region26: #{tpu_custom_call.1} parent=1 // pred_check
      _
    $region27: #{tpu_custom_call.1} parent=1 // pred_check_branch
      %50 = sbr.rel (0) target = $region29
    $region28: #{tpu_custom_call.1} parent=1 // pred_region
      %52 = dma.done [#allocation7], 8192
    $region29: #{tpu_custom_call.1} parent=1 // pred_fallthru
      _
    %p53 = scmp.eq.s32.totalorder 0, 0
    // Predicated region
    $region30: #{tpu_custom_call.1} parent=1 // pred_check
      %p54 = pneg %p53
    $region31: #{tpu_custom_call.1} parent=1 // pred_check_branch
      %56 = sbr.rel (%p54) target = $region33
    $region32: #{tpu_custom_call.1} parent=1 // pred_region
      %v57 = vld [vmem:[%s2] sm:$0x3]
      %v59 = vperm.slane %v57, 0
      %v60 = vperm.slane %v57, 1
      %63 = vst [vmem:[#allocation2] sm:$0xff] %v59
      %64 = vst [vmem:[#allocation2 + $0x8] sm:$0xff] %v60
      %65 = vst [vmem:[#allocation2 + $0x10] sm:$0xff] %v59
      %66 = vst [vmem:[#allocation2 + $0x18] sm:$0xff] %v60
    $region33: #{tpu_custom_call.1} parent=1 // pred_fallthru
      _
    %v67 = vld [vmem:[#allocation3] sm:$0xff]
    %v68 = vld [vmem:[#allocation3 + $0x8] sm:$0xff]
    %v69 = vld [vmem:[#allocation3 + $0x10] sm:$0xff]
    %v70 = vld [vmem:[#allocation3 + $0x18] sm:$0xff]
    %v71 = vld [vmem:[#allocation2] sm:$0xff]
    %v72 = vld [vmem:[#allocation2 + $0x8] sm:$0xff]
    %v73 = vld [vmem:[#allocation2 + $0x10] sm:$0xff]
    %v74 = vld [vmem:[#allocation2 + $0x18] sm:$0xff]
    %v75 = vld [vmem:[#allocation6] sm:$0xff]
    %v76 = vld [vmem:[#allocation6 + $0x8] sm:$0xff]
    %v77 = vld [vmem:[#allocation6 + $0x10] sm:$0xff]
    %v78 = vld [vmem:[#allocation6 + $0x18] sm:$0xff]
    %v79 = vld [vmem:[#allocation6 + $0x20] sm:$0xff]
    %v80 = vld [vmem:[#allocation6 + $0x28] sm:$0xff]
    %v81 = vld [vmem:[#allocation6 + $0x30] sm:$0xff]
    %v82 = vld [vmem:[#allocation6 + $0x38] sm:$0xff]
    %v83 = vld [vmem:[#allocation6 + $0x40] sm:$0xff]
    %v84 = vld [vmem:[#allocation6 + $0x48] sm:$0xff]
    %v85 = vld [vmem:[#allocation6 + $0x50] sm:$0xff]
    %v86 = vld [vmem:[#allocation6 + $0x58] sm:$0xff]
    %v87 = vld [vmem:[#allocation6 + $0x60] sm:$0xff]
    %v88 = vld [vmem:[#allocation6 + $0x68] sm:$0xff]
    %v89 = vld [vmem:[#allocation6 + $0x70] sm:$0xff]
    %v90 = vld [vmem:[#allocation6 + $0x78] sm:$0xff]
    %v91 = vld [vmem:[#allocation6 + $0x80] sm:$0xff]
    %v92 = vld [vmem:[#allocation6 + $0x88] sm:$0xff]
    %v93 = vld [vmem:[#allocation6 + $0x90] sm:$0xff]
    %v94 = vld [vmem:[#allocation6 + $0x98] sm:$0xff]
    %v95 = vld [vmem:[#allocation6 + $0xa0] sm:$0xff]
    %v96 = vld [vmem:[#allocation6 + $0xa8] sm:$0xff]
    %v97 = vld [vmem:[#allocation6 + $0xb0] sm:$0xff]
    %v98 = vld [vmem:[#allocation6 + $0xb8] sm:$0xff]
    %v99 = vld [vmem:[#allocation6 + $0xc0] sm:$0xff]
    %v100 = vld [vmem:[#allocation6 + $0xc8] sm:$0xff]
    %v101 = vld [vmem:[#allocation6 + $0xd0] sm:$0xff]
    %v102 = vld [vmem:[#allocation6 + $0xd8] sm:$0xff]
    %v103 = vld [vmem:[#allocation6 + $0xe0] sm:$0xff]
    %v104 = vld [vmem:[#allocation6 + $0xe8] sm:$0xff]
    %v105 = vld [vmem:[#allocation6 + $0xf0] sm:$0xff]
    %v106 = vld [vmem:[#allocation6 + $0xf8] sm:$0xff]
    %v107 = vld [vmem:[#allocation6 + $0x100] sm:$0xff]
    %v108 = vld [vmem:[#allocation6 + $0x108] sm:$0xff]
    %v109 = vld [vmem:[#allocation6 + $0x110] sm:$0xff]
    %v110 = vld [vmem:[#allocation6 + $0x118] sm:$0xff]
    %v111 = vld [vmem:[#allocation6 + $0x120] sm:$0xff]
    %v112 = vld [vmem:[#allocation6 + $0x128] sm:$0xff]
    %v113 = vld [vmem:[#allocation6 + $0x130] sm:$0xff]
    %v114 = vld [vmem:[#allocation6 + $0x138] sm:$0xff]
    %v115 = vld [vmem:[#allocation6 + $0x140] sm:$0xff]
    %v116 = vld [vmem:[#allocation6 + $0x148] sm:$0xff]
    %v117 = vld [vmem:[#allocation6 + $0x150] sm:$0xff]
    %v118 = vld [vmem:[#allocation6 + $0x158] sm:$0xff]
    %v119 = vld [vmem:[#allocation6 + $0x160] sm:$0xff]
    %v120 = vld [vmem:[#allocation6 + $0x168] sm:$0xff]
    %v121 = vld [vmem:[#allocation6 + $0x170] sm:$0xff]
    %v122 = vld [vmem:[#allocation6 + $0x178] sm:$0xff]
    %v123 = vld [vmem:[#allocation6 + $0x180] sm:$0xff]
    %v124 = vld [vmem:[#allocation6 + $0x188] sm:$0xff]
    %v125 = vld [vmem:[#allocation6 + $0x190] sm:$0xff]
    %v126 = vld [vmem:[#allocation6 + $0x198] sm:$0xff]
    %v127 = vld [vmem:[#allocation6 + $0x1a0] sm:$0xff]
    %v128 = vld [vmem:[#allocation6 + $0x1a8] sm:$0xff]
    %v129 = vld [vmem:[#allocation6 + $0x1b0] sm:$0xff]
    %v130 = vld [vmem:[#allocation6 + $0x1b8] sm:$0xff]
    %v131 = vld [vmem:[#allocation6 + $0x1c0] sm:$0xff]
    %v132 = vld [vmem:[#allocation6 + $0x1c8] sm:$0xff]
    %v133 = vld [vmem:[#allocation6 + $0x1d0] sm:$0xff]
    %v134 = vld [vmem:[#allocation6 + $0x1d8] sm:$0xff]
    %v135 = vld [vmem:[#allocation6 + $0x1e0] sm:$0xff]
    %v136 = vld [vmem:[#allocation6 + $0x1e8] sm:$0xff]
    %v137 = vld [vmem:[#allocation6 + $0x1f0] sm:$0xff]
    %v138 = vld [vmem:[#allocation6 + $0x1f8] sm:$0xff]
    %139 = vmatpush.msra.mxu0 %v105
    %140 = vmatpush.msra.mxu0 %v103
    %141 = vmatpush.msra.mxu0 %v101
    %142 = vmatpush.msra.mxu0 %v99
    %143 = vmatpush.msra.mxu0 %v97
    %144 = vmatpush.msra.mxu0 %v95
    %145 = vmatpush.msra.mxu0 %v93
    %146 = vmatpush.msra.mxu0 %v91
    %147 = vmatpush.msra.mxu0 %v89
    %148 = vmatpush.msra.mxu0 %v87
    %149 = vmatpush.msra.mxu0 %v85
    %150 = vmatpush.msra.mxu0 %v83
    %151 = vmatpush.msra.mxu0 %v81
    %152 = vmatpush.msra.mxu0 %v79
    %153 = vmatpush.msra.mxu0 %v77
    %154 = vmatpush.msra.mxu0 %v75
    %155 = vmatmul.f32.gmra.mxu0 %v67
    %v156 = vpop.f32.mrf.mxu0
    %v157 = vadd.f32 0.0, %v156
    %158 = vmatmul.f32.gmra.mxu0 %v69
    %v159 = vpop.f32.mrf.mxu0
    %v160 = vadd.f32 0.0, %v159
    %161 = vdwg.mxu0
    %162 = vmatpush.msra.mxu0 %v137
    %163 = vmatpush.msra.mxu0 %v135
    %164 = vmatpush.msra.mxu0 %v133
    %165 = vmatpush.msra.mxu0 %v131
    %166 = vmatpush.msra.mxu0 %v129
    %167 = vmatpush.msra.mxu0 %v127
    %168 = vmatpush.msra.mxu0 %v125
    %169 = vmatpush.msra.mxu0 %v123
    %170 = vmatpush.msra.mxu0 %v121
    %171 = vmatpush.msra.mxu0 %v119
    %172 = vmatpush.msra.mxu0 %v117
    %173 = vmatpush.msra.mxu0 %v115
    %174 = vmatpush.msra.mxu0 %v113
    %175 = vmatpush.msra.mxu0 %v111
    %176 = vmatpush.msra.mxu0 %v109
    %177 = vmatpush.msra.mxu0 %v107
    %178 = vmatmul.f32.gmra.mxu0 %v68
    %v179 = vpop.f32.mrf.mxu0
    %v180 = vadd.f32 %v157, %v179
    %181 = vmatmul.f32.gmra.mxu0 %v70
    %v182 = vpop.f32.mrf.mxu0
    %v183 = vadd.f32 %v160, %v182
    %184 = vdwg.mxu0
    %185 = vmatpush.msra.mxu0 %v106
    %186 = vmatpush.msra.mxu0 %v104
    %187 = vmatpush.msra.mxu0 %v102
    %188 = vmatpush.msra.mxu0 %v100
    %189 = vmatpush.msra.mxu0 %v98
    %190 = vmatpush.msra.mxu0 %v96
    %191 = vmatpush.msra.mxu0 %v94
    %192 = vmatpush.msra.mxu0 %v92
    %193 = vmatpush.msra.mxu0 %v90
    %194 = vmatpush.msra.mxu0 %v88
    %195 = vmatpush.msra.mxu0 %v86
    %196 = vmatpush.msra.mxu0 %v84
    %197 = vmatpush.msra.mxu0 %v82
    %198 = vmatpush.msra.mxu0 %v80
    %199 = vmatpush.msra.mxu0 %v78
    %200 = vmatpush.msra.mxu0 %v76
    %201 = vmatmul.f32.gmra.mxu0 %v67
    %v202 = vpop.f32.mrf.mxu0
    %v203 = vadd.f32 0.0, %v202
    %204 = vmatmul.f32.gmra.mxu0 %v69
    %v205 = vpop.f32.mrf.mxu0
    %v206 = vadd.f32 0.0, %v205
    %207 = vdwg.mxu0
    %208 = vmatpush.msra.mxu0 %v138
    %209 = vmatpush.msra.mxu0 %v136
    %210 = vmatpush.msra.mxu0 %v134
    %211 = vmatpush.msra.mxu0 %v132
    %212 = vmatpush.msra.mxu0 %v130
    %213 = vmatpush.msra.mxu0 %v128
    %214 = vmatpush.msra.mxu0 %v126
    %215 = vmatpush.msra.mxu0 %v124
    %216 = vmatpush.msra.mxu0 %v122
    %217 = vmatpush.msra.mxu0 %v120
    %218 = vmatpush.msra.mxu0 %v118
    %219 = vmatpush.msra.mxu0 %v116
    %220 = vmatpush.msra.mxu0 %v114
    %221 = vmatpush.msra.mxu0 %v112
    %222 = vmatpush.msra.mxu0 %v110
    %223 = vmatpush.msra.mxu0 %v108
    %224 = vmatmul.f32.gmra.mxu0 %v68
    %v225 = vpop.f32.mrf.mxu0
    %v226 = vadd.f32 %v203, %v225
    %227 = vmatmul.f32.gmra.mxu0 %v70
    %v228 = vpop.f32.mrf.mxu0
    %v229 = vadd.f32 %v206, %v228
    %230 = vdwg.mxu0
    %v231 = vadd.f32 %v71, %v180
    %v232 = vadd.f32 %v72, %v226
    %v233 = vadd.f32 %v73, %v183
    %v234 = vadd.f32 %v74, %v229
    %235 = vst [vmem:[#allocation2] sm:$0xff] %v231
    %236 = vst [vmem:[#allocation2 + $0x8] sm:$0xff] %v232
    %237 = vst [vmem:[#allocation2 + $0x10] sm:$0xff] %v233
    %238 = vst [vmem:[#allocation2 + $0x18] sm:$0xff] %v234
    // Predicated region
    $region34: #{tpu_custom_call.1} parent=1 // pred_check
      %p239 = pneg %p53
    $region35: #{tpu_custom_call.1} parent=1 // pred_check_branch
      %241 = sbr.rel (%p239) target = $region37
    $region36: #{tpu_custom_call.1} parent=1 // pred_region
      %v242 = vld [vmem:[#allocation2] sm:$0xff]
      %v243 = vld [vmem:[#allocation2 + $0x8] sm:$0xff]
      %v244 = vld [vmem:[#allocation2 + $0x10] sm:$0xff]
      %v245 = vld [vmem:[#allocation2 + $0x18] sm:$0xff]
      %v246 = vld [vmem:[%s3] sm:$0xff]
      %v247 = vld [vmem:[%s3 + $0x8] sm:$0xff]
      %v248 = vld [vmem:[%s4] sm:$0xff]
      %250 = vst [vmem:[#allocation1] ss:$2 sm:$0xff] %v248
      %v251 = vld.sshfl [vmem:[#allocation1] sm:$0xff pattern:$0x75316420]
      %v252 = vld.sshfl [vmem:[#allocation1 + $0x8] sm:$0xff pattern:$0x75316420]
      %vm253 = vcmask 31744
      %v255 = vsel %vm253, %v246, 0
      %v258 = vsel %vm253, %v247, 0
      %vm260 = vcmask 1043456
      %v261 = vsel %vm260, %v251, 0
      %v263 = vsel %vm260, %v252, 0
      %265 = vmatpush.msra.mxu0 0.0
      %266 = vmatpush.msra.mxu0 0.0
      %267 = vmatpush.msra.mxu0 0.0
      %268 = vmatpush.msra.mxu0 0.0
      %269 = vmatpush.msra.mxu0 0.0
      %270 = vmatpush.msra.mxu0 0.0
      %271 = vmatpush.msra.mxu0 0.0
      %272 = vmatpush.msra.mxu0 0.0
      %273 = vmatpush.msra.mxu0 0.0
      %274 = vmatpush.msra.mxu0 0.0
      %275 = vmatpush.msra.mxu0 0.0
      %276 = vmatpush.msra.mxu0 0.0
      %277 = vmatpush.msra.mxu0 0.0
      %278 = vmatpush.msra.mxu0 0.0
      %279 = vmatpush.msra.mxu0 0.0
      %280 = vmatpush.msra.mxu0 %v261
      %281 = vmatmul.f32.gmra.mxu0 %v255
      %v282 = vpop.f32.mrf.mxu0
      %v283 = vadd.f32 0.0, %v282
      %284 = vmatmul.f32.gmra.mxu0 %v258
      %v285 = vpop.f32.mrf.mxu0
      %v286 = vadd.f32 0.0, %v285
      %287 = vdwg.mxu0
      %288 = vmatpush.msra.mxu0 0.0
      %289 = vmatpush.msra.mxu0 0.0
      %290 = vmatpush.msra.mxu0 0.0
      %291 = vmatpush.msra.mxu0 0.0
      %292 = vmatpush.msra.mxu0 0.0
      %293 = vmatpush.msra.mxu0 0.0
      %294 = vmatpush.msra.mxu0 0.0
      %295 = vmatpush.msra.mxu0 0.0
      %296 = vmatpush.msra.mxu0 0.0
      %297 = vmatpush.msra.mxu0 0.0
      %298 = vmatpush.msra.mxu0 0.0
      %299 = vmatpush.msra.mxu0 0.0
      %300 = vmatpush.msra.mxu0 0.0
      %301 = vmatpush.msra.mxu0 0.0
      %302 = vmatpush.msra.mxu0 0.0
      %303 = vmatpush.msra.mxu0 %v263
      %304 = vmatmul.f32.gmra.mxu0 %v255
      %v305 = vpop.f32.mrf.mxu0
      %v306 = vadd.f32 0.0, %v305
      %307 = vmatmul.f32.gmra.mxu0 %v258
      %v308 = vpop.f32.mrf.mxu0
      %v309 = vadd.f32 0.0, %v308
      %310 = vdwg.mxu0
      %v311 = vadd.f32 %v242, %v283
      %v312 = vadd.f32 %v243, %v306
      %v313 = vadd.f32 %v244, %v286
      %v314 = vadd.f32 %v245, %v309
      %315 = vst [vmem:[#allocation8] sm:$0xff] %v311
      %316 = vst [vmem:[#allocation8 + $0x8] sm:$0xff] %v312
      %317 = vst [vmem:[#allocation8 + $0x10] sm:$0xff] %v313
      %318 = vst [vmem:[#allocation8 + $0x18] sm:$0xff] %v314
    $region37: #{tpu_custom_call.1} parent=1 // pred_fallthru
      _
    // Predicated region
    $region38: #{tpu_custom_call.1} parent=1 // pred_check
      _
    $region39: #{tpu_custom_call.1} parent=1 // pred_check_branch
      %320 = sbr.rel (0) target = $region41
    $region40: #{tpu_custom_call.1} parent=1 // pred_region
      %322 = vsyncadd [#allocation5], 0
      %s323 = sshll.u32 [#allocation8], 4
      %s324 = int_to_ptr.vmem [resolvable:$true] %s323
      %s325 = sshll.u32 %s5, 4
      %s326 = int_to_ptr.hbm [resolvable:$true] %s325
      %331 = dma.vmem_to_hbm [thread:$0]  %s324, 512, %s326, [#allocation5], 256, 256, 16
    $region41: #{tpu_custom_call.1} parent=1 // pred_fallthru
      _
    // Predicated region
    $region42: #{tpu_custom_call.1} parent=1 // pred_check
      _
    $region43: #{tpu_custom_call.1} parent=1 // pred_check_branch
      %333 = sbr.rel (0) target = $region45
    $region44: #{tpu_custom_call.1} parent=1 // pred_region
      %335 = dma.done [#allocation5], 512
    $region45: #{tpu_custom_call.1} parent=1 // pred_fallthru
      _
    %336 = vsyncpa [#allocation4], 1
    %337 = vsyncpa [#allocation7], 1
    %338 = vsyncpa [#allocation5], 1

</llo_original>
